<compile_context>
chip_gen: v7x
topology: tpu7x:2x2x1
jax: 0.10.0
libtpu: 0.0.40
codegen_flags: <defaults>
</compile_context>

<pallas_src>
import functools

import jax
import jax.numpy as jnp
import numpy as np
from jax import lax
from jax.experimental import pallas as pl
from jax.experimental.pallas import tpu as pltpu


def _to_2tuple(v):
    return (v, v) if isinstance(v, int) else tuple(v)


def _round_up(x, m):
    return ((x + m - 1) // m) * m


def _extract_patches(x, patch_size, stride):
    """im2col: (B, C, H, W) -> (B, h*w, C*ph*pw).

    Feature order is (C slowest, kh, kw fastest), matching the flattening of a
    PyTorch Conv2d weight (E, C, ph, pw); patch order is row-major over the
    (h, w) output grid, matching flatten(2).transpose(1, 2).
    """
    B, C, H, W = x.shape
    ph, pw = patch_size
    sh, sw = stride
    h = (H - ph) // sh + 1
    w = (W - pw) // sw + 1
    K = C * ph * pw
    if (sh, sw) == (ph, pw):
        # Non-overlapping patches: pure reshape/transpose, zero data duplication.
        xc = x[:, :, :h * ph, :w * pw]
        p = xc.reshape(B, C, h, ph, w, pw)
        p = p.transpose(0, 2, 4, 1, 3, 5)            # (B, h, w, C, ph, pw)
        patches = p.reshape(B, h * w, K)
    else:
        # Overlapping patches: one fused XLA patch-extraction op with a
        # channel-last output layout so no transpose copy is needed.
        # Output feature index = c*ph*pw + kh*pw + kw  (channel slowest).
        p = lax.conv_general_dilated_patches(
            x, filter_shape=(ph, pw), window_strides=(sh, sw),
            padding="VALID",
            dimension_numbers=("NCHW", "OIHW", "NHWC"))   # (B, h, w, K)
        patches = p.reshape(B, h * w, K)
    return patches, (h, w)


def _patch_embed_kernel(p_ref, w_ref, b_ref, o_ref):
    # p_ref: (TM, Kp)  w_ref: (Kp, Ep)  b_ref: (1, Ep) f32  o_ref: (TM, Ep)
    acc = jnp.dot(p_ref[...], w_ref[...], preferred_element_type=jnp.float32)
    o_ref[...] = (acc + b_ref[...]).astype(o_ref.dtype)


@functools.partial(
    jax.jit,
    static_argnames=("patch_size", "stride", "compute_dtype", "out_dtype"))
def patch_embed_new(x, weight, bias, *, patch_size, stride,
                    compute_dtype=jnp.bfloat16, out_dtype=None):
    """PatchEmbed_new.forward.

    x: (B, C, H, W); weight: (E, C, ph, pw) [Conv2d OIHW]; bias: (E,).
    Returns (B, num_patches, E) in `out_dtype` (defaults to x.dtype).
    """
    patch_size = _to_2tuple(patch_size)
    stride = _to_2tuple(stride)
    B, C, H, W = x.shape
    E = weight.shape[0]
    ph, pw = patch_size
    K = C * ph * pw
    out_dtype = x.dtype if out_dtype is None else out_dtype

    # Cast BEFORE im2col so the duplicated patches array is materialized,
    # padded and streamed at compute_dtype width (no arithmetic happens before
    # the matmul, so this is numerically identical to casting afterwards).
    if x.dtype != compute_dtype:
        x = x.astype(compute_dtype)

    patches, (h, w) = _extract_patches(x, patch_size, stride)   # (B, P, K)
    P = h * w
    rows = B * P
    patches = patches.reshape(rows, K)
    w_mat = weight.reshape(E, K).T.astype(compute_dtype)         # (K, E)
    b_mat = bias.reshape(1, E).astype(jnp.float32)

    # ---- tile sizing --------------------------------------------------------
    compute_isz = jnp.dtype(compute_dtype).itemsize
    out_isz = jnp.dtype(out_dtype).itemsize
    Kp = _round_up(K, 128)                 # lane & contraction alignment
    Ep = _round_up(E, 128)                 # lane-dense (unmasked) stores
    row_align = 16 if compute_isz < 4 else 8   # bf16 packs 2 rows / sublane

    # Weight + bias are VMEM-resident across the whole grid (constant block
    # index); patches / output tiles are double-buffered.  Stay within a
    # conservative 12 MiB budget (fits v5e's 16 MiB default scoped VMEM).
    resident = 2 * (Kp * Ep * compute_isz + Ep * 4)
    budget = 12 * 1024 * 1024
    tm = 1024
    while tm > row_align and (
            resident + 2 * tm * (Kp * compute_isz + Ep * out_isz)) > budget:
        tm //= 2
    tm = max(row_align, min(tm, _round_up(rows, row_align)))
    rows_p = _round_up(rows, tm)
    n_rows = rows_p // tm

    if rows_p != rows or Kp != K:
        patches = jnp.pad(patches, ((0, rows_p - rows), (0, Kp - K)))
    if Kp != K or Ep != E:
        w_mat = jnp.pad(w_mat, ((0, Kp - K), (0, Ep - E)))
    if Ep != E:
        b_mat = jnp.pad(b_mat, ((0, 0), (0, Ep - E)))

    # Actual DMA pattern: patches read once, weight/bias resident (read once),
    # output written once.
    cost = pl.CostEstimate(
        flops=2 * rows_p * Kp * Ep,
        transcendentals=0,
        bytes_accessed=rows_p * Kp * compute_isz
        + Kp * Ep * compute_isz
        + Ep * 4
        + rows_p * Ep * out_isz)

    out = pl.pallas_call(
        _patch_embed_kernel,
        out_shape=jax.ShapeDtypeStruct((rows_p, Ep), out_dtype),
        # 1-D grid over row tiles: weight/bias stay VMEM-resident, the big
        # patches operand streams exactly once, stores are lane-dense, and the
        # single "parallel" axis shards row tiles across v7x's two TCs.
        grid=(n_rows,),
        in_specs=[
            pl.BlockSpec((tm, Kp), lambda i: (i, 0)),
            pl.BlockSpec((Kp, Ep), lambda i: (0, 0)),
            pl.BlockSpec((1, Ep), lambda i: (0, 0)),
        ],
        out_specs=pl.BlockSpec((tm, Ep), lambda i: (i, 0)),
        compiler_params=pltpu.CompilerParams(
            dimension_semantics=("parallel",)),
        cost_estimate=cost,
    )(patches, w_mat, b_mat)

    return out[:rows, :E].reshape(B, P, E)


def _reference(x, weight, bias, patch_size, stride):
    """Pure-JAX reference (== PyTorch Conv2d + flatten(2).transpose(1,2))."""
    sh, sw = _to_2tuple(stride)
    y = lax.conv_general_dilated(
        x, weight, window_strides=(sh, sw), padding="VALID",
        dimension_numbers=("NCHW", "OIHW", "NCHW"))
    y = y + bias.reshape(1, -1, 1, 1)
    B, E, h, w = y.shape
    return y.reshape(B, E, h * w).transpose(0, 2, 1)


if __name__ == "__main__":
    # Small, module-consistent shapes (overlapping patches like the default
    # stride=10 < patch=16 of PatchEmbed_new).
    B, C, H, W = 2, 3, 16, 16

    key = jax.random.PRNGKey(0)
    kx, kw, kb = jax.random.split(key, 3)
    x = jax.random.normal(kx, (B, C, H, W), dtype=jnp.float32)

    def run_case(embed_dim, patch_size, stride, compute_dtype, out_dtype,
                 rtol, atol):
        ph, pw = _to_2tuple(patch_size)
        sh, sw = _to_2tuple(stride)
        weight = jax.random.normal(
            kw, (embed_dim, C, ph, pw), dtype=jnp.float32) * 0.02
        bias = jax.random.normal(kb, (embed_dim,), dtype=jnp.float32) * 0.02

        out = patch_embed_new(x, weight, bias, patch_size=patch_size,
                              stride=stride, compute_dtype=compute_dtype,
                              out_dtype=out_dtype)
        out = jax.block_until_ready(out)
        ref = jax.block_until_ready(
            _reference(x, weight, bias, (ph, pw), (sh, sw)))

        h = (H - ph) // sh + 1
        w = (W - pw) // sw + 1
        assert out.shape == (B, h * w, embed_dim), out.shape
        np.testing.assert_allclose(
            np.asarray(out, dtype=np.float32), np.asarray(ref),
            rtol=rtol, atol=atol)

    # Overlapping patches, bf16 streaming + f32 accumulate, lane-dense E=128.
    run_case(128, (4, 4), (2, 2), jnp.bfloat16, None, rtol=3e-2, atol=1e-2)
    # Same config, bf16 output (halved output write).
    run_case(128, (4, 4), (2, 2), jnp.bfloat16, jnp.bfloat16,
             rtol=3e-2, atol=1e-2)
    # Full f32: exact layout / ordering check (overlapping path, NHWC im2col).
    run_case(128, (4, 4), (2, 2), jnp.float32, None, rtol=1e-5, atol=1e-5)
    # Non-overlapping (stride == patch): reshape-only im2col path.
    run_case(128, (4, 4), (4, 4), jnp.float32, None, rtol=1e-5, atol=1e-5)
    # Small E (not a multiple of 128): exercises the Ep padding + slice path.
    run_case(32, (4, 4), (2, 2), jnp.float32, None, rtol=1e-5, atol=1e-5)

    print("KERNEL_OK")
</pallas_src>

<mosaic_0001>
module attributes {stable_mosaic.version = 11 : i64} {
  func.func @_patch_embed_kernel(%arg0: i32, %arg1: memref<112x128xbf16, #tpu.memory_space<vmem>>, %arg2: memref<128x128xbf16, #tpu.memory_space<vmem>>, %arg3: memref<1x128xf32, #tpu.memory_space<vmem>>, %arg4: memref<112x128xf32, #tpu.memory_space<vmem>>) attributes {dimension_semantics = [#tpu.dimension_semantics<parallel>], iteration_bounds = array<i64: 1>, scalar_prefetch = 0 : i64, scratch_operands = 0 : i64, tpu.core_type = #tpu.core_type<tc>, window_params = [{transform_indices = @transform_0, window_bounds = array<i64: 112, 128>}, {pipeline_mode = #tpu.pipeline_mode<synchronous>, transform_indices = @transform_1, window_bounds = array<i64: 128, 128>}, {pipeline_mode = #tpu.pipeline_mode<synchronous>, transform_indices = @transform_2, window_bounds = array<i64: 1, 128>}, {transform_indices = @transform_3, window_bounds = array<i64: 112, 128>}]} {
    %c0 = arith.constant 0 : index
    %c0_0 = arith.constant 0 : index
    %0 = vector.load %arg1[%c0, %c0_0] : memref<112x128xbf16, #tpu.memory_space<vmem>>, vector<112x128xbf16>
    %c0_1 = arith.constant 0 : index
    %c0_2 = arith.constant 0 : index
    %1 = vector.load %arg2[%c0_1, %c0_2] : memref<128x128xbf16, #tpu.memory_space<vmem>>, vector<128x128xbf16>
    %cst = arith.constant dense<0.000000e+00> : vector<112x128xf32>
    %2 = tpu.matmul %0, %1, %cst {dimension_numbers = #tpu.dot_dimension_numbers<[1], [0], [0], [1], [0, 0, 1, 1], [], []>} : vector<112x128xbf16>, vector<128x128xbf16>, vector<112x128xf32> -> vector<112x128xf32>
    %c0_3 = arith.constant 0 : index
    %c0_4 = arith.constant 0 : index
    %3 = vector.load %arg3[%c0_3, %c0_4] : memref<1x128xf32, #tpu.memory_space<vmem>>, vector<1x128xf32>
    %4 = vector.broadcast %3 : vector<1x128xf32> to vector<112x128xf32>
    %5 = arith.addf %2, %4 : vector<112x128xf32>
    %c0_5 = arith.constant 0 : index
    %c0_6 = arith.constant 0 : index
    %6 = vector.load %arg4[%c0_5, %c0_6] : memref<112x128xf32, #tpu.memory_space<vmem>>, vector<112x128xf32>
    tpu.vector_store %arg4[%c0_5, %c0_6], %5 {strides = array<i32>} : memref<112x128xf32, #tpu.memory_space<vmem>>, vector<112x128xf32>,
    return
  }
  func.func @transform_0(%arg0: i32) -> (i32, i32) {
    %c0_i32 = arith.constant 0 : i32
    %c0_i32_0 = arith.constant 0 : i32
    return %arg0, %c0_i32 : i32, i32
  }
  func.func @transform_1(%arg0: i32) -> (i32, i32) {
    %c0_i32 = arith.constant 0 : i32
    %c0_i32_0 = arith.constant 0 : i32
    %c0_i32_1 = arith.constant 0 : i32
    return %c0_i32, %c0_i32_0 : i32, i32
  }
  func.func @transform_2(%arg0: i32) -> (i32, i32) {
    %c0_i32 = arith.constant 0 : i32
    %c0_i32_0 = arith.constant 0 : i32
    %c0_i32_1 = arith.constant 0 : i32
    return %c0_i32, %c0_i32_0 : i32, i32
  }
  func.func @transform_3(%arg0: i32) -> (i32, i32) {
    %c0_i32 = arith.constant 0 : i32
    %c0_i32_0 = arith.constant 0 : i32
    return %arg0, %c0_i32 : i32, i32
  }
}

</mosaic_0001>

<llo_original>
// kernel: patch_embed_new.1
$region0: #{patch_embed_new.1}
  #allocation0 [shape = 'u32[]', space=smem, size = 0x4, offset = 0x4, fixed_abs, tag = 'smem constant byte address 0x4 - core index']
  #allocation1 [shape = 'u32[144,128]{1,0:T(1,128)}', space=vmem, size = 0x12000, scoped, tag = 'internal scratch']
  %s0 = inlined_call_operand.vmem [shape: bf16[112,128], index: 0, kind: input, shape index: {}]
  %s1 = inlined_call_operand.vmem [shape: bf16[128,128], index: 1, kind: input, shape index: {}]
  %s2 = inlined_call_operand.vmem [shape: f32[1,128], index: 2, kind: input, shape index: {}]
  %s3 = inlined_call_operand.vmem [shape: f32[112,128], index: 3, kind: output, shape index: {}]
  %s4 = sld [smem:[#allocation0]]
  $region22: #{patch_embed_new.1} parent=0
    _
  %s6 = ssub.s32 1, %s4
  %s7 = scalar_select 0, %s6, %s4
  // Predicated region
  $region2: #{patch_embed_new.1} parent=0 // pred_check
    _
  $region3: #{patch_embed_new.1} parent=0 // pred_check_branch
    %9 = sbr.rel (0) target = $region5
  $region4: #{patch_embed_new.1} parent=0 // pred_region
    _
  $region5: #{patch_embed_new.1} parent=0 // pred_fallthru
    _
  // Predicated region
  $region6: #{patch_embed_new.1} parent=0 // pred_check
    _
  $region7: #{patch_embed_new.1} parent=0 // pred_check_branch
    %11 = sbr.rel (0) target = $region9
  $region8: #{patch_embed_new.1} parent=0 // pred_region
    _
  $region9: #{patch_embed_new.1} parent=0 // pred_fallthru
    _
  // Predicated region
  $region10: #{patch_embed_new.1} parent=0 // pred_check
    _
  $region11: #{patch_embed_new.1} parent=0 // pred_check_branch
    %13 = sbr.rel (0) target = $region13
  $region12: #{patch_embed_new.1} parent=0 // pred_region
    _
  $region13: #{patch_embed_new.1} parent=0 // pred_fallthru
    _
  %v15 = vld [vmem:[%s0] sm:$0xf]
  %v16 = vld [vmem:[%s0 + $0x4] sm:$0xf]
  %v17 = vld [vmem:[%s0 + $0x8] sm:$0xf]
  %v18 = vld [vmem:[%s0 + $0xc] sm:$0xf]
  %v19 = vld [vmem:[%s0 + $0x10] sm:$0xf]
  %v20 = vld [vmem:[%s0 + $0x14] sm:$0xf]
  %v21 = vld [vmem:[%s0 + $0x18] sm:$0xf]
  %v22 = vld [vmem:[%s0 + $0x1c] sm:$0xf]
  %v23 = vld [vmem:[%s0 + $0x20] sm:$0xf]
  %v24 = vld [vmem:[%s0 + $0x24] sm:$0xf]
  %v25 = vld [vmem:[%s0 + $0x28] sm:$0xf]
  %v26 = vld [vmem:[%s0 + $0x2c] sm:$0xf]
  %v27 = vld [vmem:[%s0 + $0x30] sm:$0xf]
  %v28 = vld [vmem:[%s0 + $0x34] sm:$0xf]
  %v29 = vld [vmem:[%s1] sm:$0xf]
  %v30 = vld [vmem:[%s1 + $0x4] sm:$0xf]
  %v31 = vld [vmem:[%s1 + $0x8] sm:$0xf]
  %v32 = vld [vmem:[%s1 + $0xc] sm:$0xf]
  %v33 = vld [vmem:[%s1 + $0x10] sm:$0xf]
  %v34 = vld [vmem:[%s1 + $0x14] sm:$0xf]
  %v35 = vld [vmem:[%s1 + $0x18] sm:$0xf]
  %v36 = vld [vmem:[%s1 + $0x1c] sm:$0xf]
  %v37 = vld [vmem:[%s1 + $0x20] sm:$0xf]
  %v38 = vld [vmem:[%s1 + $0x24] sm:$0xf]
  %v39 = vld [vmem:[%s1 + $0x28] sm:$0xf]
  %v40 = vld [vmem:[%s1 + $0x2c] sm:$0xf]
  %v41 = vld [vmem:[%s1 + $0x30] sm:$0xf]
  %v42 = vld [vmem:[%s1 + $0x34] sm:$0xf]
  %v43 = vld [vmem:[%s1 + $0x38] sm:$0xf]
  %v44 = vld [vmem:[%s1 + $0x3c] sm:$0xf]
  %v45 = vld [vmem:[%s2] sm:$0x1]
  %v47 = vlaneseq
  %v48 = vshrl.u32 %v47, 7
  %v49 = vsub.s32 0, %v48
  %v50 = vrot.slane %v45, %v49
  %v66 = vunpack.c.l.b16 %v15
  %v67 = vunpack.c.l.b16 %v16
  %v68 = vunpack.c.l.b16 %v17
  %v69 = vunpack.c.l.b16 %v18
  %v70 = vunpack.c.l.b16 %v19
  %v71 = vunpack.c.l.b16 %v20
  %v72 = vunpack.c.l.b16 %v21
  %v73 = vunpack.c.l.b16 %v22
  %v74 = vunpack.c.l.b16 %v23
  %v75 = vunpack.c.l.b16 %v24
  %v76 = vunpack.c.l.b16 %v25
  %v77 = vunpack.c.l.b16 %v26
  %v78 = vunpack.c.l.b16 %v27
  %v79 = vunpack.c.l.b16 %v28
  %v80 = vpack.c.b16 %v67, %v66
  %v81 = vpack.c.b16 %v69, %v68
  %v82 = vpack.c.b16 %v71, %v70
  %v83 = vpack.c.b16 %v73, %v72
  %v84 = vpack.c.b16 %v75, %v74
  %v85 = vpack.c.b16 %v77, %v76
  %v86 = vpack.c.b16 %v79, %v78
  %v110 = vunpack.c.l.b16 %v29
  %v111 = vunpack.c.l.b16 %v30
  %v112 = vunpack.c.l.b16 %v31
  %v113 = vunpack.c.l.b16 %v32
  %v114 = vunpack.c.l.b16 %v33
  %v115 = vunpack.c.l.b16 %v34
  %v116 = vunpack.c.l.b16 %v35
  %v117 = vunpack.c.l.b16 %v36
  %v118 = vunpack.c.l.b16 %v37
  %v119 = vunpack.c.l.b16 %v38
  %v120 = vunpack.c.l.b16 %v39
  %v121 = vunpack.c.l.b16 %v40
  %v122 = vunpack.c.l.b16 %v41
  %v123 = vunpack.c.l.b16 %v42
  %v124 = vunpack.c.l.b16 %v43
  %v125 = vunpack.c.l.b16 %v44
  %v126 = vpack.c.b16 %v111, %v110
  %v127 = vpack.c.b16 %v113, %v112
  %v128 = vpack.c.b16 %v115, %v114
  %v129 = vpack.c.b16 %v117, %v116
  %v130 = vpack.c.b16 %v119, %v118
  %v131 = vpack.c.b16 %v121, %v120
  %v132 = vpack.c.b16 %v123, %v122
  %v133 = vpack.c.b16 %v125, %v124
  %142 = vmatprep.subr.bf16.mxu0 0
  %143 = vmatpush1.bf16.msra.mxu0 %v126
  %144 = vmatprep.subr.bf16.mxu0 0
  %145 = vmatpush1.bf16.msra.mxu0 %v127
  %146 = vmatprep.subr.bf16.mxu0 0
  %147 = vmatpush1.bf16.msra.mxu0 %v128
  %148 = vmatprep.subr.bf16.mxu0 0
  %149 = vmatpush1.bf16.msra.mxu0 %v129
  %150 = vmatprep.subr.bf16.mxu0 0
  %151 = vmatpush1.bf16.msra.mxu0 %v130
  %152 = vmatprep.subr.bf16.mxu0 0
  %153 = vmatpush1.bf16.msra.mxu0 %v131
  %154 = vmatprep.subr.bf16.mxu0 0
  %155 = vmatpush1.bf16.msra.mxu0 %v132
  %156 = vmatprep.subr.bf16.mxu0 0
  %157 = vmatpush1.bf16.msra.mxu0 %v133
  %158 = vmatprep.subr.bf16.mxu0 0
  %159 = vmatpush1.bf16.msra.mxu0 0
  %160 = vmatprep.subr.bf16.mxu0 0
  %161 = vmatpush1.bf16.msra.mxu0 0
  %162 = vmatprep.subr.bf16.mxu0 0
  %163 = vmatpush1.bf16.msra.mxu0 0
  %164 = vmatprep.subr.bf16.mxu0 0
  %165 = vmatpush1.bf16.msra.mxu0 0
  %166 = vmatprep.subr.bf16.mxu0 0
  %167 = vmatpush1.bf16.msra.mxu0 0
  %168 = vmatprep.subr.bf16.mxu0 0
  %169 = vmatpush1.bf16.msra.mxu0 0
  %170 = vmatprep.subr.bf16.mxu0 0
  %171 = vmatpush1.bf16.msra.mxu0 0
  %172 = vmatprep.subr.bf16.mxu0 0
  %173 = vmatpush1.bf16.msra.mxu0 0
  %174 = vmatprep.mubr.bf16.mxu0 0
  %175 = vmatmul.mubr.bf16.gmra.mrb[0].mxu0 %v80
  %v176 = vpop.f32.mrb[0].mxu0
  %v177 = vadd.f32 %v50, %v176
  %v178 = vpop.f32.mrb[0].mxu0
  %v179 = vpop.f32.mrb[0].mxu0
  %v180 = vadd.f32 %v50, %v179
  %v181 = vpop.f32.mrb[0].mxu0
  %182 = vmatprep.mubr.bf16.mxu0 0
  %183 = vmatmul.mubr.bf16.gmra.mrb[0].mxu0 %v81
  %v184 = vpop.f32.mrb[0].mxu0
  %v185 = vadd.f32 %v50, %v184
  %v186 = vpop.f32.mrb[0].mxu0
  %v187 = vpop.f32.mrb[0].mxu0
  %v188 = vadd.f32 %v50, %v187
  %v189 = vpop.f32.mrb[0].mxu0
  %190 = vmatprep.mubr.bf16.mxu0 0
  %191 = vmatmul.mubr.bf16.gmra.mrb[0].mxu0 %v82
  %v192 = vpop.f32.mrb[0].mxu0
  %v193 = vadd.f32 %v50, %v192
  %v194 = vpop.f32.mrb[0].mxu0
  %v195 = vpop.f32.mrb[0].mxu0
  %v196 = vadd.f32 %v50, %v195
  %v197 = vpop.f32.mrb[0].mxu0
  %198 = vmatprep.mubr.bf16.mxu0 0
  %199 = vmatmul.mubr.bf16.gmra.mrb[0].mxu0 %v83
  %v200 = vpop.f32.mrb[0].mxu0
  %v201 = vadd.f32 %v50, %v200
  %v202 = vpop.f32.mrb[0].mxu0
  %v203 = vpop.f32.mrb[0].mxu0
  %v204 = vadd.f32 %v50, %v203
  %v205 = vpop.f32.mrb[0].mxu0
  %206 = vmatprep.mubr.bf16.mxu0 0
  %207 = vmatmul.mubr.bf16.gmra.mrb[0].mxu0 %v84
  %v208 = vpop.f32.mrb[0].mxu0
  %v209 = vadd.f32 %v50, %v208
  %v210 = vpop.f32.mrb[0].mxu0
  %v211 = vpop.f32.mrb[0].mxu0
  %v212 = vadd.f32 %v50, %v211
  %v213 = vpop.f32.mrb[0].mxu0
  %214 = vmatprep.mubr.bf16.mxu0 0
  %215 = vmatmul.mubr.bf16.gmra.mrb[0].mxu0 %v85
  %v216 = vpop.f32.mrb[0].mxu0
  %v217 = vadd.f32 %v50, %v216
  %v218 = vpop.f32.mrb[0].mxu0
  %v219 = vpop.f32.mrb[0].mxu0
  %v220 = vadd.f32 %v50, %v219
  %v221 = vpop.f32.mrb[0].mxu0
  %222 = vmatprep.mubr.bf16.mxu0 0
  %223 = vmatmul.mubr.bf16.gmra.mrb[0].mxu0 %v86
  %v224 = vpop.f32.mrb[0].mxu0
  %v225 = vadd.f32 %v50, %v224
  %v226 = vpop.f32.mrb[0].mxu0
  %v227 = vpop.f32.mrb[0].mxu0
  %v228 = vadd.f32 %v50, %v227
  %v229 = vpop.f32.mrb[0].mxu0
  %230 = vdwg.mxu0
  %231 = vst [vmem:[%s3] sm:$0xff] %v177
  %232 = vst [vmem:[%s3 + $0x8] sm:$0xff] %v180
  %233 = vst [vmem:[%s3 + $0x10] sm:$0xff] %v185
  %234 = vst [vmem:[%s3 + $0x18] sm:$0xff] %v188
  %235 = vst [vmem:[%s3 + $0x20] sm:$0xff] %v193
  %236 = vst [vmem:[%s3 + $0x28] sm:$0xff] %v196
  %237 = vst [vmem:[%s3 + $0x30] sm:$0xff] %v201
  %238 = vst [vmem:[%s3 + $0x38] sm:$0xff] %v204
  %239 = vst [vmem:[%s3 + $0x40] sm:$0xff] %v209
  %240 = vst [vmem:[%s3 + $0x48] sm:$0xff] %v212
  %241 = vst [vmem:[%s3 + $0x50] sm:$0xff] %v217
  %242 = vst [vmem:[%s3 + $0x58] sm:$0xff] %v220
  %243 = vst [vmem:[%s3 + $0x60] sm:$0xff] %v225
  %244 = vst [vmem:[%s3 + $0x68] sm:$0xff] %v228
  // Predicated region
  $region14: #{patch_embed_new.1} parent=0 // pred_check
    _
  $region15: #{patch_embed_new.1} parent=0 // pred_check_branch
    %246 = sbr.rel (0) target = $region17
  $region16: #{patch_embed_new.1} parent=0 // pred_region
    _
  $region17: #{patch_embed_new.1} parent=0 // pred_fallthru
    _
  // Predicated region
  $region18: #{patch_embed_new.1} parent=0 // pred_check
    _
  $region19: #{patch_embed_new.1} parent=0 // pred_check_branch
    %248 = sbr.rel (0) target = $region21
  $region20: #{patch_embed_new.1} parent=0 // pred_region
    _
  $region21: #{patch_embed_new.1} parent=0 // pred_fallthru
    _

</llo_original>
